<compile_context>
chip_gen: v7x
topology: tpu7x:2x2x1
jax: 0.10.0
libtpu: 0.0.40
codegen_flags: <defaults>
</compile_context>

<pallas_src>
import functools

import jax
import jax.numpy as jnp
from jax import lax
from jax.experimental import pallas as pl
from jax.experimental.pallas import tpu as pltpu


def _zero_conv2d_kernel(x_ref, w_ref, o_ref, patch_ref, *, H, W):
    # x_ref     : (Nb, Cin, H*W)        VMEM  activations, lane-dense flattened
    # w_ref     : (Cout, 9*Cin + 1)     VMEM  gain-folded weights; last col = bias
    # o_ref     : (Nb, Cout, H*W)       VMEM  output, lane-dense flattened
    # patch_ref : (9*Cin + 1, H*W) f32  VMEM  im2col slab (+ constant ones row)
    Nb, Cin, HW = x_ref.shape

    # Constant-1 row that multiplies the bias column of w_ref.
    patch_ref[9 * Cin:9 * Cin + 1, :] = jnp.ones((1, HW), jnp.float32)

    # Border masks: positions where a given tap falls on the constant-1 pad.
    # (These are also exactly the positions corrupted by the flat roll wrap.)
    pos = lax.broadcasted_iota(jnp.int32, (Cin, HW), 1)
    col = pos % W
    top_m = pos < W                    # y == 0        (used by ky == 0 taps)
    bot_m = pos >= (H - 1) * W         # y == H-1      (used by ky == 2 taps)
    left_m = col == 0                  # x == 0        (used by kx == 0 taps)
    right_m = col == (W - 1)           # x == W-1      (used by kx == 2 taps)

    w_f32 = w_ref[...].astype(jnp.float32)     # (Cout, 9*Cin+1), hoisted

    for b in range(Nb):                        # static unrolled batch loop
        xb = x_ref[b].astype(jnp.float32)      # (Cin, HW)

        # ---- build im2col slab: row (ky*3+kx)*Cin + ci = shifted channel ci --
        for ky in range(3):
            for kx in range(3):
                d = (ky - 1) * W + (kx - 1)    # flat offset of this tap
                if d == 0:
                    tap = xb
                else:
                    # tap[p] = xb[p + d]  (jnp.roll semantics, XLU rotate)
                    tap = pltpu.roll(xb, shift=(-d) % HW, axis=1)
                mask = None
                for use, m in ((ky == 0, top_m), (ky == 2, bot_m),
                               (kx == 0, left_m), (kx == 2, right_m)):
                    if use:
                        mask = m if mask is None else jnp.logical_or(mask, m)
                if mask is not None:
                    tap = jnp.where(mask, 1.0, tap)    # constant-1 pad value
                t = ky * 3 + kx
                patch_ref[t * Cin:(t + 1) * Cin, :] = tap

        # ---- one MXU matmul: (Cout, 9*Cin+1) @ (9*Cin+1, HW) -> (Cout, HW) ---
        out_b = jnp.dot(w_f32, patch_ref[...],
                        preferred_element_type=jnp.float32)
        o_ref[b] = out_b.astype(o_ref.dtype)   # full-block, unmasked store


def zero_conv2d(x_nchw, weight_oihw, bias, scale_1c11):
    """ZeroConv2d.forward.  x_nchw: (N, Cin, H, W) -> (N, Cout, H, W)."""
    N, Cin, H, W = x_nchw.shape
    Cout = weight_oihw.shape[0]
    HW = H * W

    # ---- parameter glue (tiny, wrapper-side; activations untouched) ---------
    gain = jnp.exp(scale_1c11.reshape(Cout).astype(jnp.float32) * 3.0)  # (Cout,)
    w_scaled = weight_oihw.astype(jnp.float32) * gain[:, None, None, None]
    b_scaled = bias.reshape(Cout).astype(jnp.float32) * gain
    # (Cout, Cin, 3, 3) -> (Cout, ky, kx, ci) -> (Cout, 9*Cin); append bias col.
    w_mat = jnp.transpose(w_scaled, (0, 2, 3, 1)).reshape(Cout, 9 * Cin)
    w_aug = jnp.concatenate([w_mat, b_scaled[:, None]], axis=1)  # (Cout, 9*Cin+1)

    # Lane-dense view of the activations (contiguous reshape, no HBM pass).
    x_flat = x_nchw.reshape(N, Cin, HW)

    # Batch-per-step choice: fewest grid steps while keeping 2 steps when N>=2
    # so both v7x TensorCores get work under "parallel".
    if N >= 2 and N % 2 == 0:
        n_steps, Nb = 2, N // 2
    else:
        n_steps, Nb = N, 1

    kernel = functools.partial(_zero_conv2d_kernel, H=H, W=W)

    out_flat = pl.pallas_call(
        kernel,
        out_shape=jax.ShapeDtypeStruct((N, Cout, HW), x_nchw.dtype),
        grid_spec=pltpu.PrefetchScalarGridSpec(
            num_scalar_prefetch=0,
            grid=(n_steps,),
            in_specs=[
                # activations: Nb images per step, lane-dense flattened
                pl.BlockSpec((Nb, Cin, HW), lambda n: (n, 0, 0)),
                # gain-folded weights + bias column (full tiny array, VMEM)
                pl.BlockSpec((Cout, 9 * Cin + 1), lambda n: (0, 0)),
            ],
            out_specs=pl.BlockSpec((Nb, Cout, HW), lambda n: (n, 0, 0)),
            scratch_shapes=[
                pltpu.VMEM((9 * Cin + 1, HW), jnp.float32),   # im2col slab
            ],
        ),
        compiler_params=pltpu.CompilerParams(
            dimension_semantics=("parallel",),
            vmem_limit_bytes=32 * 1024 * 1024,
        ),
    )(x_flat, w_aug)

    return out_flat.reshape(N, Cout, H, W)


def _reference(x_nchw, weight_oihw, bias, scale_1c11):
    """Pure-JAX reference matching the PyTorch forward exactly."""
    x_pad = jnp.pad(x_nchw, ((0, 0), (0, 0), (1, 1), (1, 1)),
                    constant_values=1.0)
    out = lax.conv_general_dilated(
        x_pad, weight_oihw, window_strides=(1, 1), padding="VALID",
        dimension_numbers=("NCHW", "OIHW", "NCHW"))
    out = out + bias.reshape(1, -1, 1, 1)
    out = out * jnp.exp(scale_1c11 * 3.0)
    return out


if __name__ == "__main__":
    N, Cin, Cout, H, W = 2, 4, 4, 16, 16

    key = jax.random.PRNGKey(0)
    kx, kw, kb, ks = jax.random.split(key, 4)

    x = jax.random.normal(kx, (N, Cin, H, W), dtype=jnp.float32)

    # ZeroConv2d zero-inits its params (output is all-zeros at init); use small
    # deterministic random values so the kernel computes a non-trivial result.
    weight = 0.1 * jax.random.normal(kw, (Cout, Cin, 3, 3), dtype=jnp.float32)
    bias = 0.1 * jax.random.normal(kb, (Cout,), dtype=jnp.float32)
    scale = 0.1 * jax.random.normal(ks, (1, Cout, 1, 1), dtype=jnp.float32)

    out = zero_conv2d(x, weight, bias, scale)
    out = jax.block_until_ready(out)

    ref = _reference(x, weight, bias, scale)
    assert out.shape == (N, Cout, H, W)
    assert jnp.allclose(out, ref, atol=1e-4, rtol=1e-4), "mismatch vs reference"

    # Faithful zero-init case (output must be exactly 0).
    out0 = zero_conv2d(x, jnp.zeros_like(weight), jnp.zeros_like(bias),
                       jnp.zeros_like(scale))
    out0 = jax.block_until_ready(out0)
    assert jnp.allclose(out0, jnp.zeros_like(out0))

    print("KERNEL_OK")
</pallas_src>

<mosaic_0001>
module attributes {stable_mosaic.version = 11 : i64} {
  func.func @_zero_conv2d_kernel(%arg0: i32, %arg1: memref<1x4x256xf32, #tpu.memory_space<vmem>>, %arg2: memref<4x37xf32, #tpu.memory_space<vmem>>, %arg3: memref<1x4x256xf32, #tpu.memory_space<vmem>>, %arg4: memref<37x256xf32, #tpu.memory_space<vmem>>) attributes {dimension_semantics = [#tpu.dimension_semantics<parallel>], iteration_bounds = array<i64: 2>, scalar_prefetch = 0 : i64, scratch_operands = 1 : i64, tpu.core_type = #tpu.core_type<tc>, window_params = [{transform_indices = @transform_0, window_bounds = array<i64: 1, 4, 256>}, {pipeline_mode = #tpu.pipeline_mode<synchronous>, transform_indices = @transform_1, window_bounds = array<i64: 4, 37>}, {transform_indices = @transform_2, window_bounds = array<i64: 1, 4, 256>}]} {
    %cst = arith.constant 1.000000e+00 : f32
    %0 = vector.broadcast %cst : f32 to vector<1x256xf32>
    %c36 = arith.constant 36 : index
    %c0 = arith.constant 0 : index
    %1 = vector.load %arg4[%c36, %c0] : memref<37x256xf32, #tpu.memory_space<vmem>>, vector<1x256xf32>
    tpu.vector_store %arg4[%c36, %c0], %0 {strides = array<i32>} : memref<37x256xf32, #tpu.memory_space<vmem>>, vector<1x256xf32>,
    %2 = tpu.iota {dimensions = array<i32: 1>} : vector<4x256xi32>
    %c16_i32 = arith.constant 16 : i32
    %c0_i32 = arith.constant 0 : i32
    %3 = arith.cmpi eq, %c16_i32, %c0_i32 : i32
    %c1_i32 = arith.constant 1 : i32
    %4 = arith.select %3, %c1_i32, %c16_i32 : i32
    %5 = vector.broadcast %4 : i32 to vector<4x256xi32>
    %6 = arith.remsi %2, %5 : vector<4x256xi32>
    %c0_i32_0 = arith.constant 0 : i32
    %7 = vector.broadcast %c0_i32_0 : i32 to vector<4x256xi32>
    %8 = arith.cmpi ne, %6, %7 : vector<4x256xi32>
    %c0_i32_1 = arith.constant 0 : i32
    %9 = vector.broadcast %c0_i32_1 : i32 to vector<4x256xi32>
    %10 = arith.cmpi slt, %6, %9 : vector<4x256xi32>
    %c0_i32_2 = arith.constant 0 : i32
    %11 = arith.cmpi slt, %4, %c0_i32_2 : i32
    %12 = vector.broadcast %11 : i1 to vector<4x256xi1>
    %13 = vector.broadcast %12 : vector<4x256xi1> to vector<4x256xi1>
    %14 = arith.xori %10, %13 : vector<4x256xi1>
    %15 = arith.andi %14, %8 : vector<4x256xi1>
    %16 = vector.broadcast %4 : i32 to vector<4x256xi32>
    %17 = arith.addi %6, %16 : vector<4x256xi32>
    %18 = arith.select %15, %17, %6 : vector<4x256xi1>, vector<4x256xi32>
    %c16_i32_3 = arith.constant 16 : i32
    %19 = vector.broadcast %c16_i32_3 : i32 to vector<4x256xi32>
    %20 = arith.cmpi slt, %2, %19 : vector<4x256xi32>
    %c240_i32 = arith.constant 240 : i32
    %21 = vector.broadcast %c240_i32 : i32 to vector<4x256xi32>
    %22 = arith.cmpi sge, %2, %21 : vector<4x256xi32>
    %c0_i32_4 = arith.constant 0 : i32
    %23 = vector.broadcast %c0_i32_4 : i32 to vector<4x256xi32>
    %24 = arith.cmpi eq, %18, %23 : vector<4x256xi32>
    %c15_i32 = arith.constant 15 : i32
    %25 = vector.broadcast %c15_i32 : i32 to vector<4x256xi32>
    %26 = arith.cmpi eq, %18, %25 : vector<4x256xi32>
    %c0_5 = arith.constant 0 : index
    %c0_6 = arith.constant 0 : index
    %27 = vector.load %arg2[%c0_5, %c0_6] : memref<4x37xf32, #tpu.memory_space<vmem>>, vector<4x37xf32>
    %c0_7 = arith.constant 0 : index
    %c0_8 = arith.constant 0 : index
    %c0_9 = arith.constant 0 : index
    %28 = vector.load %arg1[%c0_7, %c0_8, %c0_9] : memref<1x4x256xf32, #tpu.memory_space<vmem>>, vector<1x4x256xf32>
    %29 = vector.shape_cast %28 : vector<1x4x256xf32> to vector<4x256xf32>
    %c17_i32 = arith.constant 17 : i32
    %30 = tpu.dynamic_rotate %29 by %c17_i32 dim 1 : vector<4x256xf32>, i32 -> vector<4x256xf32>
    %31 = arith.ori %20, %24 : vector<4x256xi1>
    %cst_10 = arith.constant 1.000000e+00 : f32
    %32 = vector.broadcast %cst_10 : f32 to vector<4x256xf32>
    %33 = arith.select %31, %32, %30 : vector<4x256xi1>, vector<4x256xf32>
    %c0_11 = arith.constant 0 : index
    %c0_12 = arith.constant 0 : index
    %34 = vector.load %arg4[%c0_11, %c0_12] : memref<37x256xf32, #tpu.memory_space<vmem>>, vector<4x256xf32>
    tpu.vector_store %arg4[%c0_11, %c0_12], %33 {strides = array<i32>} : memref<37x256xf32, #tpu.memory_space<vmem>>, vector<4x256xf32>,
    %c16_i32_13 = arith.constant 16 : i32
    %35 = tpu.dynamic_rotate %29 by %c16_i32_13 dim 1 : vector<4x256xf32>, i32 -> vector<4x256xf32>
    %cst_14 = arith.constant 1.000000e+00 : f32
    %36 = vector.broadcast %cst_14 : f32 to vector<4x256xf32>
    %37 = arith.select %20, %36, %35 : vector<4x256xi1>, vector<4x256xf32>
    %c4 = arith.constant 4 : index
    %c0_15 = arith.constant 0 : index
    %38 = vector.load %arg4[%c4, %c0_15] : memref<37x256xf32, #tpu.memory_space<vmem>>, vector<4x256xf32>
    tpu.vector_store %arg4[%c4, %c0_15], %37 {strides = array<i32>} : memref<37x256xf32, #tpu.memory_space<vmem>>, vector<4x256xf32>,
    %c15_i32_16 = arith.constant 15 : i32
    %39 = tpu.dynamic_rotate %29 by %c15_i32_16 dim 1 : vector<4x256xf32>, i32 -> vector<4x256xf32>
    %40 = arith.ori %20, %26 : vector<4x256xi1>
    %cst_17 = arith.constant 1.000000e+00 : f32
    %41 = vector.broadcast %cst_17 : f32 to vector<4x256xf32>
    %42 = arith.select %40, %41, %39 : vector<4x256xi1>, vector<4x256xf32>
    %c8 = arith.constant 8 : index
    %c0_18 = arith.constant 0 : index
    %43 = vector.load %arg4[%c8, %c0_18] : memref<37x256xf32, #tpu.memory_space<vmem>>, vector<4x256xf32>
    tpu.vector_store %arg4[%c8, %c0_18], %42 {strides = array<i32>} : memref<37x256xf32, #tpu.memory_space<vmem>>, vector<4x256xf32>,
    %c1_i32_19 = arith.constant 1 : i32
    %44 = tpu.dynamic_rotate %29 by %c1_i32_19 dim 1 : vector<4x256xf32>, i32 -> vector<4x256xf32>
    %cst_20 = arith.constant 1.000000e+00 : f32
    %45 = vector.broadcast %cst_20 : f32 to vector<4x256xf32>
    %46 = arith.select %24, %45, %44 : vector<4x256xi1>, vector<4x256xf32>
    %c12 = arith.constant 12 : index
    %c0_21 = arith.constant 0 : index
    %47 = vector.load %arg4[%c12, %c0_21] : memref<37x256xf32, #tpu.memory_space<vmem>>, vector<4x256xf32>
    tpu.vector_store %arg4[%c12, %c0_21], %46 {strides = array<i32>} : memref<37x256xf32, #tpu.memory_space<vmem>>, vector<4x256xf32>,
    %c16 = arith.constant 16 : index
    %c0_22 = arith.constant 0 : index
    %48 = vector.load %arg4[%c16, %c0_22] : memref<37x256xf32, #tpu.memory_space<vmem>>, vector<4x256xf32>
    tpu.vector_store %arg4[%c16, %c0_22], %29 {strides = array<i32>} : memref<37x256xf32, #tpu.memory_space<vmem>>, vector<4x256xf32>,
    %c255_i32 = arith.constant 255 : i32
    %49 = tpu.dynamic_rotate %29 by %c255_i32 dim 1 : vector<4x256xf32>, i32 -> vector<4x256xf32>
    %cst_23 = arith.constant 1.000000e+00 : f32
    %50 = vector.broadcast %cst_23 : f32 to vector<4x256xf32>
    %51 = arith.select %26, %50, %49 : vector<4x256xi1>, vector<4x256xf32>
    %c20 = arith.constant 20 : index
    %c0_24 = arith.constant 0 : index
    %52 = vector.load %arg4[%c20, %c0_24] : memref<37x256xf32, #tpu.memory_space<vmem>>, vector<4x256xf32>
    tpu.vector_store %arg4[%c20, %c0_24], %51 {strides = array<i32>} : memref<37x256xf32, #tpu.memory_space<vmem>>, vector<4x256xf32>,
    %c241_i32 = arith.constant 241 : i32
    %53 = tpu.dynamic_rotate %29 by %c241_i32 dim 1 : vector<4x256xf32>, i32 -> vector<4x256xf32>
    %54 = arith.ori %22, %24 : vector<4x256xi1>
    %cst_25 = arith.constant 1.000000e+00 : f32
    %55 = vector.broadcast %cst_25 : f32 to vector<4x256xf32>
    %56 = arith.select %54, %55, %53 : vector<4x256xi1>, vector<4x256xf32>
    %c24 = arith.constant 24 : index
    %c0_26 = arith.constant 0 : index
    %57 = vector.load %arg4[%c24, %c0_26] : memref<37x256xf32, #tpu.memory_space<vmem>>, vector<4x256xf32>
    tpu.vector_store %arg4[%c24, %c0_26], %56 {strides = array<i32>} : memref<37x256xf32, #tpu.memory_space<vmem>>, vector<4x256xf32>,
    %c240_i32_27 = arith.constant 240 : i32
    %58 = tpu.dynamic_rotate %29 by %c240_i32_27 dim 1 : vector<4x256xf32>, i32 -> vector<4x256xf32>
    %cst_28 = arith.constant 1.000000e+00 : f32
    %59 = vector.broadcast %cst_28 : f32 to vector<4x256xf32>
    %60 = arith.select %22, %59, %58 : vector<4x256xi1>, vector<4x256xf32>
    %c28 = arith.constant 28 : index
    %c0_29 = arith.constant 0 : index
    %61 = vector.load %arg4[%c28, %c0_29] : memref<37x256xf32, #tpu.memory_space<vmem>>, vector<4x256xf32>
    tpu.vector_store %arg4[%c28, %c0_29], %60 {strides = array<i32>} : memref<37x256xf32, #tpu.memory_space<vmem>>, vector<4x256xf32>,
    %c239_i32 = arith.constant 239 : i32
    %62 = tpu.dynamic_rotate %29 by %c239_i32 dim 1 : vector<4x256xf32>, i32 -> vector<4x256xf32>
    %63 = arith.ori %22, %26 : vector<4x256xi1>
    %cst_30 = arith.constant 1.000000e+00 : f32
    %64 = vector.broadcast %cst_30 : f32 to vector<4x256xf32>
    %65 = arith.select %63, %64, %62 : vector<4x256xi1>, vector<4x256xf32>
    %c32 = arith.constant 32 : index
    %c0_31 = arith.constant 0 : index
    %66 = vector.load %arg4[%c32, %c0_31] : memref<37x256xf32, #tpu.memory_space<vmem>>, vector<4x256xf32>
    tpu.vector_store %arg4[%c32, %c0_31], %65 {strides = array<i32>} : memref<37x256xf32, #tpu.memory_space<vmem>>, vector<4x256xf32>,
    %c0_32 = arith.constant 0 : index
    %c0_33 = arith.constant 0 : index
    %67 = vector.load %arg4[%c0_32, %c0_33] : memref<37x256xf32, #tpu.memory_space<vmem>>, vector<37x256xf32>
    %cst_34 = arith.constant dense<0.000000e+00> : vector<4x256xf32>
    %68 = tpu.matmul %27, %67, %cst_34 {dimension_numbers = #tpu.dot_dimension_numbers<[1], [0], [0], [1], [0, 0, 1, 1], [], []>} : vector<4x37xf32>, vector<37x256xf32>, vector<4x256xf32> -> vector<4x256xf32>
    %c0_35 = arith.constant 0 : index
    %c0_36 = arith.constant 0 : index
    %c0_37 = arith.constant 0 : index
    %69 = vector.load %arg3[%c0_35, %c0_36, %c0_37] : memref<1x4x256xf32, #tpu.memory_space<vmem>>, vector<1x4x256xf32>
    %70 = vector.shape_cast %69 : vector<1x4x256xf32> to vector<4x256xf32>
    %71 = vector.shape_cast %68 : vector<4x256xf32> to vector<1x4x256xf32>
    tpu.vector_store %arg3[%c0_35, %c0_36, %c0_37], %71 {strides = array<i32>} : memref<1x4x256xf32, #tpu.memory_space<vmem>>, vector<1x4x256xf32>,
    return
  }
  func.func @transform_0(%arg0: i32) -> (i32, i32, i32) {
    %c0_i32 = arith.constant 0 : i32
    %c0_i32_0 = arith.constant 0 : i32
    %c0_i32_1 = arith.constant 0 : i32
    return %arg0, %c0_i32, %c0_i32_0 : i32, i32, i32
  }
  func.func @transform_1(%arg0: i32) -> (i32, i32) {
    %c0_i32 = arith.constant 0 : i32
    %c0_i32_0 = arith.constant 0 : i32
    %c0_i32_1 = arith.constant 0 : i32
    return %c0_i32, %c0_i32_0 : i32, i32
  }
  func.func @transform_2(%arg0: i32) -> (i32, i32, i32) {
    %c0_i32 = arith.constant 0 : i32
    %c0_i32_0 = arith.constant 0 : i32
    %c0_i32_1 = arith.constant 0 : i32
    return %arg0, %c0_i32, %c0_i32_0 : i32, i32, i32
  }
}

</mosaic_0001>

<llo_original>
// kernel: tpu_custom_call.1
$region0: #{tpu_custom_call.1}
  #allocation0 [shape = 'u32[]', space=smem, size = 0x4, offset = 0x4, fixed_abs, tag = 'smem constant byte address 0x4 - core index']
  #allocation1 [shape = 'u32[144,128]{1,0:T(1,128)}', space=vmem, size = 0x12000, scoped, tag = 'internal scratch']
  #allocation2 [shape = 'f32[37,256]{1,0:T(8,128)}', space=vmem, size = 0xa000, scoped, tag = 'scratch operand']
  %s0 = inlined_call_operand.hbm [shape: f32[2,4,256], index: 0, kind: input, shape index: {}]
  %s1 = inlined_call_operand.hbm [shape: f32[4,37], index: 1, kind: input, shape index: {}]
  %s2 = inlined_call_operand.hbm [shape: f32[2,4,256], index: 2, kind: output, shape index: {}]
  %s3 = sld [smem:[#allocation0]]
  $region49: #{tpu_custom_call.1} parent=0
    _
  %s5 = ssub.s32 1, %s3
  %s6 = scalar_select 0, %s5, %s3
  $region1: #{tpu_custom_call.1} parent=0
    #allocation3 [shape = 'u8[8192]{0}', space=vmem, size = 0x2000, scoped, tag = 'input window, operand 0']
    #allocation4 [shape = 's32[2]{0}', space=sflag, size = 0x8, scoped, tag = 'scoped memory for tpu_custom_call.1']
    #allocation5 [shape = 's32[2]{0}', space=sflag, size = 0x8, scoped, tag = 'scoped memory for tpu_custom_call.1']
    #allocation6 [shape = 'u8[2048]{0}', space=vmem, size = 0x800, scoped, tag = 'input window, operand 1, single buffered']
    #allocation7 [shape = 's32[1]{0}', space=sflag, size = 0x4, scoped, tag = 'scoped memory for tpu_custom_call.1']
    #allocation8 [shape = 'u8[8192]{0}', space=vmem, size = 0x2000, scoped, tag = 'output window, operand 0']
    %7 = vsyncpa [#allocation4], 0
    %s8 = scalar_lea.sflag [#allocation4], 1
    %9 = vsyncpa %s8, 0
    %10 = vsyncpa [#allocation7], 0
    %11 = vsyncpa [#allocation5], 0
    %s12 = scalar_lea.sflag [#allocation5], 1
    %13 = vsyncpa %s12, 0
    loop: start=0, step=1, limit=4
    $region2: #{tpu_custom_call.1} parent=1 // loop_pre_header
      _
    $region3: #{tpu_custom_call.1} parent=1 // loop_header
      %s15 = sphi 0, %s19
      %p16 = scmp.ge.s32.totalorder %s15, 4
      %s25 = sphi 0, %s27
      %s28 = sphi 0, %s25
      %s29 = sphi 0, %s28
      %s45 = sphi 0, %s29
      %s49 = sphi 0, %s49
      %s51 = sphi 0, %s49
      %s52 = sphi 0, %s51
      %s66 = sphi 0, %s52
      %s72 = sphi 0, %s74
      %s75 = sphi 0, %s72
      %s76 = sphi 0, %s75
      %s92 = sphi 0, %s76
    $region4: #{tpu_custom_call.1} parent=1 // loop_header_branch
      %18 = sbr.rel (%p16) target = $region8
    $region5: #{tpu_custom_call.1} parent=1 // loop_body
      %s20 = ssub.s32 %s15, 1
      %s21 = ssub.s32 %s15, 2
      %s22 = sadd.s32 %s15, 1
      %s23 = ssub.s32 %s15, %s22
      %p24 = scmp.eq.s32.totalorder %s23, 0
      %s26 = sadd.s32 %s25, 1
      %s27 = scalar_select %p24, %s25, %s26
      %p30 = pneg %p24
      %p31 = scmp.eq.s32.totalorder %s15, 1
      %p32 = por %p30, %p31
      %p33 = scmp.ne.s32.totalorder %s25, %s28
      %p34 = scmp.eq.s32.totalorder %s15, 0
      %p35 = por %p33, %p34
      %p36 = scmp.ne.s32.totalorder %s25, %s28
      %p37 = scmp.eq.s32.totalorder %s20, 1
      %p38 = por %p36, %p37
      %p39 = scmp.ne.s32.totalorder %s28, %s29
      %p40 = scmp.eq.s32.totalorder %s20, 0
      %p41 = por %p39, %p40
      %p42 = scmp.ne.s32.totalorder %s28, %s29
      %p43 = scmp.eq.s32.totalorder %s21, 1
      %p44 = por %p42, %p43
      %p46 = scmp.ne.s32.totalorder %s29, %s45
      %p47 = scmp.eq.s32.totalorder %s21, 0
      %p48 = por %p46, %p47
      %s50 = sadd.s32 %s49, 1
      %p53 = scmp.eq.s32.totalorder %s15, 1
      %p54 = scmp.ne.s32.totalorder %s49, %s51
      %p55 = scmp.eq.s32.totalorder %s15, 0
      %p56 = por %p54, %p55
      %p57 = scmp.ne.s32.totalorder %s49, %s51
      %p58 = scmp.eq.s32.totalorder %s20, 1
      %p59 = por %p57, %p58
      %p60 = scmp.ne.s32.totalorder %s51, %s52
      %p61 = scmp.eq.s32.totalorder %s20, 0
      %p62 = por %p60, %p61
      %p63 = scmp.ne.s32.totalorder %s51, %s52
      %p64 = scmp.eq.s32.totalorder %s21, 1
      %p65 = por %p63, %p64
      %p67 = scmp.ne.s32.totalorder %s52, %s66
      %p68 = scmp.eq.s32.totalorder %s21, 0
      %p69 = por %p67, %p68
      %s70 = ssub.s32 %s15, %s22
      %p71 = scmp.eq.s32.totalorder %s70, 0
      %s73 = sadd.s32 %s72, 1
      %s74 = scalar_select %p71, %s72, %s73
      %p77 = pneg %p71
      %p78 = scmp.eq.s32.totalorder %s15, 1
      %p79 = por %p77, %p78
      %p80 = scmp.ne.s32.totalorder %s72, %s75
      %p81 = scmp.eq.s32.totalorder %s15, 0
      %p82 = por %p80, %p81
      %p83 = scmp.ne.s32.totalorder %s72, %s75
      %p84 = scmp.eq.s32.totalorder %s20, 1
      %p85 = por %p83, %p84
      %p86 = scmp.ne.s32.totalorder %s75, %s76
      %p87 = scmp.eq.s32.totalorder %s20, 0
      %p88 = por %p86, %p87
      %p89 = scmp.ne.s32.totalorder %s75, %s76
      %p90 = scmp.eq.s32.totalorder %s21, 1
      %p91 = por %p89, %p90
      %p93 = scmp.ne.s32.totalorder %s76, %s92
      %p94 = scmp.eq.s32.totalorder %s21, 0
      %p95 = por %p93, %p94
      %p96 = scmp.le.s32.totalorder 1, %s15
      %p97 = scmp.lt.s32.totalorder %s15, 3
      %p98 = pnand %p96, %p97
      %p99 = pneg %p98
      // Predicated region
      $region9: #{tpu_custom_call.1} parent=5 // pred_check
        _
      $region10: #{tpu_custom_call.1} parent=5 // pred_check_branch
        %101 = sbr.rel (%p98) target = $region12
      $region11: #{tpu_custom_call.1} parent=5 // pred_region
        %s102 = ssub.s32 %s15, 1
        // Predicated region
        $region13: #{tpu_custom_call.1} parent=11 // pred_check
          %p103 = pneg %p62
        $region14: #{tpu_custom_call.1} parent=11 // pred_check_branch
          %105 = sbr.rel (%p103) target = $region16
        $region15: #{tpu_custom_call.1} parent=11 // pred_region
          %s107 = ssub.s32 64, 64
          %108 = vsyncadd [#allocation7], %s107
          %s110 = sshll.u32 [#allocation6], 4
          %s111 = int_to_ptr.vmem [resolvable:$true] %s110
          %113 = dma.hbm_to_vmem [thread:$0]  %s1, 64, %s111, [#allocation7]
        $region16: #{tpu_custom_call.1} parent=11 // pred_fallthru
          _
      $region12: #{tpu_custom_call.1} parent=5 // pred_fallthru
        _
      %p114 = scmp.lt.s32.totalorder %s15, 2
      // Predicated region
      $region17: #{tpu_custom_call.1} parent=5 // pred_check
        %p115 = pneg %p114
      $region18: #{tpu_custom_call.1} parent=5 // pred_check_branch
        %117 = sbr.rel (%p115) target = $region20
      $region19: #{tpu_custom_call.1} parent=5 // pred_region
        // Predicated region
        $region21: #{tpu_custom_call.1} parent=19 // pred_check
          %p118 = pneg %p35
        $region22: #{tpu_custom_call.1} parent=19 // pred_check_branch
          %120 = sbr.rel (%p118) target = $region24
        $region23: #{tpu_custom_call.1} parent=19 // pred_region
          %s121 = sand.u32 %s25, 1
          %s122 = scalar_lea.sflag [#allocation4], %s121
          %s123 = sand.u32 %s25, 1
          %s124 = smul.addr %s123, 8
          %s125 = scalar_lea.vmem [#allocation3], %s124
          %s127 = ssub.s32 128, 128
          %128 = vsyncadd %s122, %s127
          %s129 = smul.addr %s15, 2
          %s130 = smul.addr %s129, 64
          %s131 = scalar_lea.hbm %s0, %s130
          %s133 = sshll.u32 %s125, 4
          %s134 = int_to_ptr.vmem [resolvable:$true] %s133
          %136 = dma.hbm_to_vmem [thread:$0]  %s131, 128, %s134, %s122
        $region24: #{tpu_custom_call.1} parent=19 // pred_fallthru
          _
      $region20: #{tpu_custom_call.1} parent=5 // pred_fallthru
        _
      %p137 = scmp.le.s32.totalorder 1, %s15
      %p138 = scmp.lt.s32.totalorder %s15, 3
      %p139 = pnand %p137, %p138
      %p140 = pneg %p139
      // Predicated region
      $region25: #{tpu_custom_call.1} parent=5 // pred_check
        _
      $region26: #{tpu_custom_call.1} parent=5 // pred_check_branch
        %142 = sbr.rel (%p139) target = $region28
      $region27: #{tpu_custom_call.1} parent=5 // pred_region
        %s143 = ssub.s32 %s15, 1
        %s144 = sand.u32 %s28, 1
        %s145 = scalar_lea.sflag [#allocation4], %s144
        %s146 = sand.u32 %s28, 1
        %s147 = smul.addr %s146, 8
        %s148 = scalar_lea.vmem [#allocation3], %s147
        // Predicated region
        $region29: #{tpu_custom_call.1} parent=27 // pred_check
          %p149 = pneg %p41
        $region30: #{tpu_custom_call.1} parent=27 // pred_check_branch
          %151 = sbr.rel (%p149) target = $region32
        $region31: #{tpu_custom_call.1} parent=27 // pred_region
          %152 = dma.done %s145, 128
        $region32: #{tpu_custom_call.1} parent=27 // pred_fallthru
          _
        // Predicated region
        $region33: #{tpu_custom_call.1} parent=27 // pred_check
          %p153 = pneg %p62
        $region34: #{tpu_custom_call.1} parent=27 // pred_check_branch
          %155 = sbr.rel (%p153) target = $region36
        $region35: #{tpu_custom_call.1} parent=27 // pred_region
          %156 = dma.done [#allocation7], 64
        $region36: #{tpu_custom_call.1} parent=27 // pred_fallthru
          _
        %s157 = sand.u32 %s28, 1
        %s158 = scalar_lea.sflag [#allocation4], %s157
        %s159 = sand.u32 %s28, 1
        %s160 = smul.addr %s159, 8
        %s161 = scalar_lea.vmem [#allocation3], %s160
        %p162 = pneg %p41
        %p163 = pneg %p38
        %p164 = pneg %p62
        %p165 = pneg %p59
        %p166 = pneg %p88
        %p167 = pneg %p85
        %s168 = sand.u32 %s75, 1
        %s169 = scalar_lea.sflag [#allocation5], %s168
        %s170 = sand.u32 %s75, 1
        %s171 = smul.addr %s170, 8
        %s172 = scalar_lea.vmem [#allocation8], %s171
        %v173 = vlaneseq
        %vm174 = vcmp.ge.s32.totalorder %v173, 0
        %vm175 = vcmp.lt.s32.totalorder %v173, 256
        %vm176 = vmand %vm174, %vm175
        %s177 = scalar_lea.vmem [#allocation2], 68
        %178 = vst.msk [vmem:[%s177] ss:$8 sm:$0x3] %vm176, 1.0
        %179 = vst.msk [vmem:[%s177] ss:$8 sm:$0x0] %vm176, 1.0
        %v180 = vlaneseq
        %v181 = vand.u32 %v180, 127
        %v182 = vadd.s32 %v181, 128
        %vm183 = vcmp.lt.s32.totalorder %v181, 0
        %v184 = vsub.s32 0, %v181
        %v185 = vsel %vm183, %v184, %v181
        %v186 = vshrl.u32 %v185, 4
        %v187 = vand.u32 %v185, 15
        %v188 = vsub.s32 0, %v187
        %v189 = vsel %vm183, %v188, %v187
        %vm190 = vcmp.lt.s32.totalorder %v182, 0
        %v191 = vsub.s32 0, %v182
        %v192 = vsel %vm190, %v191, %v182
        %v193 = vshrl.u32 %v192, 4
        %v194 = vand.u32 %v192, 15
        %v195 = vsub.s32 0, %v194
        %v196 = vsel %vm190, %v195, %v194
        %vm197 = vcmp.ne.s32.totalorder %v189, 0
        %vm198 = vcmp.ne.s32.totalorder %v196, 0
        %vm199 = vcmp.lt.s32.totalorder %v189, 0
        %vm200 = vcmp.lt.s32.totalorder %v196, 0
        %vm201 = vmand %vm199, %vm197
        %vm202 = vmand %vm200, %vm198
        %v203 = vadd.s32 %v189, 16
        %v204 = vadd.s32 %v196, 16
        %v205 = vsel %vm201, %v203, %v189
        %v206 = vsel %vm202, %v204, %v196
        %vm207 = vcmp.lt.s32.totalorder %v181, 16
        %vm208 = vcmp.lt.s32.totalorder %v182, 16
        %vm209 = vcmp.ge.s32.totalorder %v181, 240
        %vm210 = vcmp.ge.s32.totalorder %v182, 240
        %vm211 = vcmp.eq.s32.totalorder %v205, 0
        %vm212 = vcmp.eq.s32.totalorder %v206, 0
        %vm213 = vcmp.eq.s32.totalorder %v205, 15
        %vm214 = vcmp.eq.s32.totalorder %v206, 15
        %v215 = vld [vmem:[#allocation6] sm:$0xf]
        %v216 = vld [vmem:[%s148] sm:$0xff]
        %v218 = vcombine.high %v216, %v216
        %220 = vrot.lane.b32.xlu0 %v216, 17
        %v221 = vpop.permute.xlu0 %220
        %222 = vrot.lane.b32.xlu0 %v218, 17
        %v223 = vpop.permute.xlu0 %222
        %vm224 = vcmp.lt.s32.totalorder %v181, 17
        %v225 = vsel %vm224, %v221, %v223
        %v226 = vsel %vm224, %v223, %v221
        %vm227 = vmor %vm207, %vm211
        %vm228 = vmor %vm208, %vm212
        %v229 = vsel %vm227, 1.0, %v226
        %v230 = vsel %vm228, 1.0, %v225
        %231 = vst [vmem:[#allocation2] sm:$0xf] %v229
        %232 = vst [vmem:[#allocation2 + $0x8] sm:$0xf] %v230
        %233 = vrot.lane.b32.xlu0 %v216, 16
        %v234 = vpop.permute.xlu0 %233
        %235 = vrot.lane.b32.xlu0 %v218, 16
        %v236 = vpop.permute.xlu0 %235
        %v237 = vsel %vm207, %v234, %v236
        %v238 = vsel %vm207, %v236, %v234
        %v239 = vsel %vm207, 1.0, %v238
        %v240 = vsel %vm208, 1.0, %v237
        %v243 = vrot.slane %v239, 4
        %v244 = vrot.slane %v240, 4
        %247 = vst [vmem:[#allocation2] sm:$0xf0] %v243
        %248 = vst [vmem:[#allocation2 + $0x8] sm:$0xf0] %v244
        %249 = vrot.lane.b32.xlu0 %v216, 15
        %v250 = vpop.permute.xlu0 %249
        %251 = vrot.lane.b32.xlu0 %v218, 15
        %v252 = vpop.permute.xlu0 %251
        %vm253 = vcmp.lt.s32.totalorder %v181, 15
        %v254 = vsel %vm253, %v250, %v252
        %v255 = vsel %vm253, %v252, %v250
        %vm256 = vmor %vm207, %vm213
        %vm257 = vmor %vm208, %vm214
        %v258 = vsel %vm256, 1.0, %v255
        %v259 = vsel %vm257, 1.0, %v254
        %260 = vst [vmem:[#allocation2 + $0x10] sm:$0xf] %v258
        %261 = vst [vmem:[#allocation2 + $0x18] sm:$0xf] %v259
        %262 = vrot.lane.b32.xlu0 %v216, 1
        %v263 = vpop.permute.xlu0 %262
        %264 = vrot.lane.b32.xlu0 %v218, 1
        %v265 = vpop.permute.xlu0 %264
        %vm266 = vcmp.lt.s32.totalorder %v181, 1
        %v267 = vsel %vm266, %v263, %v265
        %v268 = vsel %vm266, %v265, %v263
        %v269 = vsel %vm211, 1.0, %v268
        %v270 = vsel %vm212, 1.0, %v267
        %v273 = vrot.slane %v269, 4
        %v274 = vrot.slane %v270, 4
        %277 = vst [vmem:[#allocation2 + $0x10] sm:$0xf0] %v273
        %278 = vst [vmem:[#allocation2 + $0x18] sm:$0xf0] %v274
        %279 = vst [vmem:[#allocation2 + $0x20] sm:$0xf] %v216
        %280 = vst [vmem:[#allocation2 + $0x28] sm:$0xf] %v218
        %281 = vrot.lane.b32.xlu0 %v216, 127
        %v282 = vpop.permute.xlu0 %281
        %283 = vrot.lane.b32.xlu0 %v218, 127
        %v284 = vpop.permute.xlu0 %283
        %vm285 = vcmp.lt.s32.totalorder %v181, 127
        %v286 = vsel %vm285, %v282, %v284
        %v287 = vsel %vm285, %v284, %v282
        %v288 = vsel %vm213, 1.0, %v286
        %v289 = vsel %vm214, 1.0, %v287
        %v292 = vrot.slane %v288, 4
        %v293 = vrot.slane %v289, 4
        %296 = vst [vmem:[#allocation2 + $0x20] sm:$0xf0] %v292
        %297 = vst [vmem:[#allocation2 + $0x28] sm:$0xf0] %v293
        %298 = vrot.lane.b32.xlu0 %v216, 113
        %v299 = vpop.permute.xlu0 %298
        %300 = vrot.lane.b32.xlu0 %v218, 113
        %v301 = vpop.permute.xlu0 %300
        %vm302 = vcmp.lt.s32.totalorder %v181, 113
        %v303 = vsel %vm302, %v299, %v301
        %v304 = vsel %vm302, %v301, %v299
        %vm305 = vmor %vm209, %vm211
        %vm306 = vmor %vm210, %vm212
        %v307 = vsel %vm305, 1.0, %v303
        %v308 = vsel %vm306, 1.0, %v304
        %309 = vst [vmem:[#allocation2 + $0x30] sm:$0xf] %v307
        %310 = vst [vmem:[#allocation2 + $0x38] sm:$0xf] %v308
        %311 = vrot.lane.b32.xlu0 %v216, 112
        %v312 = vpop.permute.xlu0 %311
        %313 = vrot.lane.b32.xlu0 %v218, 112
        %v314 = vpop.permute.xlu0 %313
        %vm315 = vcmp.lt.s32.totalorder %v181, 112
        %v316 = vsel %vm315, %v312, %v314
        %v317 = vsel %vm315, %v314, %v312
        %v318 = vsel %vm209, 1.0, %v316
        %v319 = vsel %vm210, 1.0, %v317
        %v322 = vrot.slane %v318, 4
        %v323 = vrot.slane %v319, 4
        %326 = vst [vmem:[#allocation2 + $0x30] sm:$0xf0] %v322
        %327 = vst [vmem:[#allocation2 + $0x38] sm:$0xf0] %v323
        %328 = vrot.lane.b32.xlu0 %v216, 111
        %v329 = vpop.permute.xlu0 %328
        %330 = vrot.lane.b32.xlu0 %v218, 111
        %v331 = vpop.permute.xlu0 %330
        %vm332 = vcmp.lt.s32.totalorder %v181, 111
        %v333 = vsel %vm332, %v329, %v331
        %v334 = vsel %vm332, %v331, %v329
        %vm335 = vmor %vm209, %vm213
        %vm336 = vmor %vm210, %vm214
        %v337 = vsel %vm335, 1.0, %v333
        %v338 = vsel %vm336, 1.0, %v334
        %339 = vst [vmem:[#allocation2 + $0x40] sm:$0xf] %v337
        %340 = vst [vmem:[#allocation2 + $0x48] sm:$0xf] %v338
        %v341 = vld [vmem:[#allocation2] sm:$0xff]
        %v342 = vld [vmem:[#allocation2 + $0x8] sm:$0xff]
        %v343 = vld [vmem:[#allocation2 + $0x10] sm:$0xff]
        %v344 = vld [vmem:[#allocation2 + $0x18] sm:$0xff]
        %v345 = vld [vmem:[#allocation2 + $0x20] sm:$0xff]
        %v346 = vld [vmem:[#allocation2 + $0x28] sm:$0xff]
        %v347 = vld [vmem:[#allocation2 + $0x30] sm:$0xff]
        %v348 = vld [vmem:[#allocation2 + $0x38] sm:$0xff]
        %v349 = vld [vmem:[#allocation2 + $0x40] sm:$0x1f]
        %v350 = vld [vmem:[#allocation2 + $0x48] sm:$0x1f]
        %vm351 = vcmask 302080
        %v353 = vsel %vm351, %v215, 0
        %vm355 = vcmask 1044480
        %v357 = vsel %vm355, %v349, 0
        %v360 = vsel %vm355, %v350, 0
        %362 = vmatprep.subr.mxu0 %v342
        %363 = vmatpush1.msra.mxu0 %v341
        %364 = vmatprep.subr.mxu0 %v344
        %365 = vmatpush1.msra.mxu0 %v343
        %366 = vmatprep.subr.mxu0 %v346
        %367 = vmatpush1.msra.mxu0 %v345
        %368 = vmatprep.subr.mxu0 %v348
        %369 = vmatpush1.msra.mxu0 %v347
        %370 = vmatprep.subr.mxu0 %v360
        %371 = vmatpush1.msra.mxu0 %v357
        %372 = vmatprep.subr.mxu0 0.0
        %373 = vmatpush1.msra.mxu0 0.0
        %374 = vmatprep.subr.mxu0 0.0
        %375 = vmatpush1.msra.mxu0 0.0
        %376 = vmatprep.subr.mxu0 0.0
        %377 = vmatpush1.msra.mxu0 0.0
        %378 = vmatprep.subr.mxu0 0.0
        %379 = vmatpush1.msra.mxu0 0.0
        %380 = vmatprep.subr.mxu0 0.0
        %381 = vmatpush1.msra.mxu0 0.0
        %382 = vmatprep.subr.mxu0 0.0
        %383 = vmatpush1.msra.mxu0 0.0
        %384 = vmatprep.subr.mxu0 0.0
        %385 = vmatpush1.msra.mxu0 0.0
        %386 = vmatprep.subr.mxu0 0.0
        %387 = vmatpush1.msra.mxu0 0.0
        %388 = vmatprep.subr.mxu0 0.0
        %389 = vmatpush1.msra.mxu0 0.0
        %390 = vmatprep.subr.mxu0 0.0
        %391 = vmatpush1.msra.mxu0 0.0
        %392 = vmatprep.subr.mxu0 0.0
        %393 = vmatpush1.msra.mxu0 0.0
        %394 = vmatprep.subr.mxu0 0.0
        %395 = vmatpush1.msra.mxu0 0.0
        %396 = vmatprep.subr.mxu0 0.0
        %397 = vmatpush1.msra.mxu0 0.0
        %398 = vmatprep.subr.mxu0 0.0
        %399 = vmatpush1.msra.mxu0 0.0
        %400 = vmatprep.subr.mxu0 0.0
        %401 = vmatpush1.msra.mxu0 0.0
        %402 = vmatprep.subr.mxu0 0.0
        %403 = vmatpush1.msra.mxu0 0.0
        %404 = vmatprep.subr.mxu0 0.0
        %405 = vmatpush1.msra.mxu0 0.0
        %406 = vmatprep.subr.mxu0 0.0
        %407 = vmatpush1.msra.mxu0 0.0
        %408 = vmatprep.subr.mxu0 0.0
        %409 = vmatpush1.msra.mxu0 0.0
        %410 = vmatprep.subr.mxu0 0.0
        %411 = vmatpush1.msra.mxu0 0.0
        %412 = vmatprep.subr.mxu0 0.0
        %413 = vmatpush1.msra.mxu0 0.0
        %414 = vmatprep.subr.mxu0 0.0
        %415 = vmatpush1.msra.mxu0 0.0
        %416 = vmatprep.subr.mxu0 0.0
        %417 = vmatpush1.msra.mxu0 0.0
        %418 = vmatprep.subr.mxu0 0.0
        %419 = vmatpush1.msra.mxu0 0.0
        %420 = vmatprep.subr.mxu0 0.0
        %421 = vmatpush1.msra.mxu0 0.0
        %422 = vmatprep.subr.mxu0 0.0
        %423 = vmatpush1.msra.mxu0 0.0
        %424 = vmatprep.subr.mxu0 0.0
        %425 = vmatpush1.msra.mxu0 0.0
        %426 = vmatprep.mubr.f32.mxu0 0.0
        %427 = vmatmul.mubr.f32.gmra.mrb[0].mxu0 %v353
        %v428 = vpop.f32.mrb[0].mxu0
        %v429 = vadd.f32 0.0, %v428
        %v430 = vpop.f32.mrb[0].mxu0
        %v431 = vadd.f32 0.0, %v430
        %432 = vdwg.mxu0
        %v435 = vcombine.low %v429, %v431
        %437 = vst [vmem:[%s172] sm:$0xff] %v435
        %s438 = sand.u32 %s75, 1
        %s439 = scalar_lea.sflag [#allocation5], %s438
        %s440 = sand.u32 %s75, 1
        %s441 = smul.addr %s440, 8
        %s442 = scalar_lea.vmem [#allocation8], %s441
        // Predicated region
        $region37: #{tpu_custom_call.1} parent=27 // pred_check
          %p443 = pneg %p85
        $region38: #{tpu_custom_call.1} parent=27 // pred_check_branch
          %445 = sbr.rel (%p443) target = $region40
        $region39: #{tpu_custom_call.1} parent=27 // pred_region
          %s447 = ssub.s32 128, 128
          %448 = vsyncadd %s439, %s447
          %s449 = smul.addr %s20, 2
          %s450 = smul.addr %s449, 64
          %s451 = scalar_lea.hbm %s2, %s450
          %s453 = sshll.u32 %s442, 4
          %s454 = int_to_ptr.vmem [resolvable:$true] %s453
          %456 = dma.vmem_to_hbm [thread:$0]  %s454, 128, %s451, %s439
        $region40: #{tpu_custom_call.1} parent=27 // pred_fallthru
          _
      $region28: #{tpu_custom_call.1} parent=5 // pred_fallthru
        _
      %p457 = scmp.le.s32.totalorder 2, %s15
      // Predicated region
      $region41: #{tpu_custom_call.1} parent=5 // pred_check
        %p458 = pneg %p457
      $region42: #{tpu_custom_call.1} parent=5 // pred_check_branch
        %460 = sbr.rel (%p458) target = $region44
      $region43: #{tpu_custom_call.1} parent=5 // pred_region
        %s461 = ssub.s32 %s15, 2
        // Predicated region
        $region45: #{tpu_custom_call.1} parent=43 // pred_check
          %p462 = pneg %p91
        $region46: #{tpu_custom_call.1} parent=43 // pred_check_branch
          %464 = sbr.rel (%p462) target = $region48
        $region47: #{tpu_custom_call.1} parent=43 // pred_region
          %s465 = sand.u32 %s76, 1
          %s466 = scalar_lea.sflag [#allocation5], %s465
          %s467 = sand.u32 %s76, 1
          %s468 = smul.addr %s467, 8
          %s469 = scalar_lea.vmem [#allocation8], %s468
          %470 = dma.done %s466, 128
        $region48: #{tpu_custom_call.1} parent=43 // pred_fallthru
          _
      $region44: #{tpu_custom_call.1} parent=5 // pred_fallthru
        _
    $region6: #{tpu_custom_call.1} parent=1 // loop_footer
      %s19 = sadd.s32 1, %s15
    $region7: #{tpu_custom_call.1} parent=1 // loop_footer_branch
      %14 = sbr.rel target = $region3
    $region8: #{tpu_custom_call.1} parent=1 // loop_exit
      _
    %471 = vsyncpa [#allocation4], 1
    %s472 = scalar_lea.sflag [#allocation4], 1
    %473 = vsyncpa %s472, 1
    %474 = vsyncpa [#allocation7], 1
    %475 = vsyncpa [#allocation5], 1
    %s476 = scalar_lea.sflag [#allocation5], 1
    %477 = vsyncpa %s476, 1

</llo_original>
